<compile_context>
chip_gen: v6e
topology: v6e:2x2x1
jax: 0.10.0
libtpu: 0.0.40
codegen_flags: <defaults>
</compile_context>

<pallas_src>
import jax
import jax.numpy as jnp
from jax.experimental import pallas as pl
from jax.experimental.pallas import tpu as pltpu


# ----------------------------------------------------------------------------
# Fused forward kernel (everything resident in VMEM, single invocation)
# ----------------------------------------------------------------------------
def fused_agent_kernel(a_ref,    # (2N, 2N) normalized block-diag adjacency
                       sel_ref,  # (2, 2N)  selected rows [A_blk[ix]; A_blk[Nx+iy]]
                       xy_ref,   # (2N, D)  stacked node embeddings [X; Y]
                       w1_ref,   # (D, H)
                       w2_ref,   # (H, OUT)
                       wh_ref,   # (2*OUT, 128) fc_h weight, unsplit
                       wp_ref,   # (128, 128)   fc_p weight, zero-padded past col 2
                       b_ref,    # (4, pack_w)  packed [b1; b2; bh; bp], lane-padded
                       o_ref):   # (1, 128) lane-dense output; probs in [:, :2]
    hidden = w1_ref.shape[1]
    out_dim = w2_ref.shape[1]
    head_w = wh_ref.shape[1]          # 128
    logit_w = wp_ref.shape[1]         # 128

    # Single load of the packed bias buffer; static value slices are free.
    bias = b_ref[...]
    b1 = bias[0:1, 0:hidden]
    b2 = bias[1:2, 0:out_dim]
    bh = bias[2:3, 0:head_w]
    bp = bias[3:4, 0:logit_w]

    # ---- GCN layer 1, both graphs fused through the block-diag adjacency ----
    agg1 = jnp.dot(a_ref[...], xy_ref[...], preferred_element_type=jnp.float32)   # (2N, D)
    h1 = jax.nn.sigmoid(
        jnp.dot(agg1, w1_ref[...], preferred_element_type=jnp.float32) + b1)      # (2N, H)

    # ---- GCN layer 2, only the two selected rows (gx / gy as rows of g) -----
    agg2 = jnp.dot(sel_ref[...], h1, preferred_element_type=jnp.float32)          # (2, H)
    g = jax.nn.sigmoid(
        jnp.dot(agg2, w2_ref[...], preferred_element_type=jnp.float32) + b2)      # (2, OUT)

    # ---- Policy head:  [gx, gy] @ Wh == gx @ Wh[:OUT] + gy @ Wh[OUT:] --------
    wh = wh_ref[...]
    h = jax.nn.sigmoid(
        jnp.dot(g[0:1, :], wh[0:out_dim, :], preferred_element_type=jnp.float32)
        + jnp.dot(g[1:2, :], wh[out_dim:, :], preferred_element_type=jnp.float32)
        + bh)                                                                      # (1, 128)

    logits = jnp.dot(h, wp_ref[...], preferred_element_type=jnp.float32) + bp      # (1, 128)

    # Lane-dense masked softmax over the first 2 lanes (padded lanes -> 0).
    lane = jax.lax.broadcasted_iota(jnp.int32, (1, logit_w), 1)
    logits = jnp.where(lane < 2, logits, jnp.float32(-1e30))
    m = jnp.max(logits, axis=1, keepdims=True)
    e = jnp.exp(logits - m)
    o_ref[...] = e * pl.reciprocal(jnp.sum(e, axis=1, keepdims=True), approx=True)


_VMEM = pl.BlockSpec(memory_space=pltpu.MemorySpace.VMEM)


# ----------------------------------------------------------------------------
# One jitted forward: adjacency normalization + packing + single pallas_call
# ----------------------------------------------------------------------------
@jax.jit
def agent_forward(params, adj_x, adj_y, first_embeddings, second_embeddings, state):
    """Agent.forward. adj_x/adj_y are the RAW 0/1 adjacency matrices; state=[ix, iy]."""
    n_x = adj_x.shape[0]
    n_y = adj_y.shape[0]
    d_in = first_embeddings.shape[1]
    hidden = params["w1"].shape[1]
    out_dim = params["w2"].shape[1]
    head_w = params["wh"].shape[1]     # 128
    n_act = params["wp"].shape[1]      # 2

    # -- adjacency normalization (same math as GCN_layer.__init__), block-diag fused.
    #    (D^-1 A_hat D^-1)_{ij} = A_hat_{ij} / (d_i * d_j),  d = column sums of A_hat.
    def normalize(a):
        a = a.astype(jnp.float32)
        a_hat = a + jnp.eye(a.shape[0], dtype=jnp.float32)
        d = jnp.sum(a_hat, axis=0)
        return a_hat / (d[:, None] * d[None, :])

    a_blk = jnp.zeros((n_x + n_y, n_x + n_y), jnp.float32)
    a_blk = a_blk.at[:n_x, :n_x].set(normalize(adj_x))
    a_blk = a_blk.at[n_x:, n_x:].set(normalize(adj_y))
    xy = jnp.concatenate([first_embeddings.astype(jnp.float32),
                          second_embeddings.astype(jnp.float32)], axis=0)

    # -- the two selected (already normalized, zero-extended) adjacency rows.
    #    Clamp + dynamic_slice => no unchecked in-kernel dynamic indexing.
    ix = jnp.clip(state[0].astype(jnp.int32), 0, n_x - 1)
    iy = jnp.clip(state[1].astype(jnp.int32), 0, n_y - 1)
    sel = jnp.concatenate(
        [jax.lax.dynamic_slice_in_dim(a_blk, ix, 1, axis=0),
         jax.lax.dynamic_slice_in_dim(a_blk, n_x + iy, 1, axis=0)], axis=0)   # (2, 2N)

    # -- pack the four bias vectors into one lane-padded buffer (single DMA).
    pack_w = -(-max(128, hidden, out_dim, head_w, n_act) // 128) * 128

    def pad_row(b):
        b = b.reshape(1, -1).astype(jnp.float32)
        return jnp.pad(b, ((0, 0), (0, pack_w - b.shape[1])))

    b_pack = jnp.concatenate([pad_row(params["b1"]), pad_row(params["b2"]),
                              pad_row(params["bh"]), pad_row(params["bp"])], axis=0)

    # -- pad fc_p's weight so the kernel output is lane-dense (1, 128).
    wp_pad = jnp.pad(params["wp"].astype(jnp.float32), ((0, 0), (0, 128 - n_act)))

    two_n = n_x + n_y
    flops = 2 * (two_n * two_n * d_in + two_n * d_in * hidden
                 + 2 * two_n * hidden + 2 * hidden * out_dim
                 + 2 * out_dim * head_w + head_w * 128)
    transc = two_n * hidden + 2 * out_dim + head_w + 128
    bytes_acc = 4 * (a_blk.size + sel.size + xy.size + params["w1"].size
                     + params["w2"].size + params["wh"].size + wp_pad.size
                     + b_pack.size + 128)

    out = pl.pallas_call(
        fused_agent_kernel,
        out_shape=jax.ShapeDtypeStruct((1, 128), jnp.float32),
        in_specs=[_VMEM] * 8,
        out_specs=_VMEM,
        cost_estimate=pl.CostEstimate(flops=int(flops),
                                      transcendentals=int(transc),
                                      bytes_accessed=int(bytes_acc)),
    )(a_blk, sel, xy,
      params["w1"].astype(jnp.float32), params["w2"].astype(jnp.float32),
      params["wh"].astype(jnp.float32), wp_pad, b_pack)

    return out[:, :n_act]                                   # (1, 2) policy


# ----------------------------------------------------------------------------
# Agent parameters
# ----------------------------------------------------------------------------
def linear_init(key, fan_in, fan_out):
    """Deterministic nn.Linear-style init: U(-1/sqrt(fan_in), 1/sqrt(fan_in))."""
    kw, kb = jax.random.split(key)
    bound = 1.0 / jnp.sqrt(fan_in)
    w = jax.random.uniform(kw, (fan_in, fan_out), jnp.float32, -bound, bound)
    b = jax.random.uniform(kb, (1, fan_out), jnp.float32, -bound, bound)
    return w, b


def init_agent_params(key, input_shape, hidden_states, output_shape):
    k1, k2, k3, k4, k5 = jax.random.split(key, 5)
    w1, b1 = linear_init(k1, input_shape, hidden_states)          # layer1.fc
    w2, b2 = linear_init(k2, hidden_states, output_shape)         # layer2.fc
    wh, bh = linear_init(k3, output_shape * 2, 128)               # fc_h
    wp, bp = linear_init(k4, 128, 2)                              # fc_p
    w_f = jax.random.uniform(k5, (output_shape, 1), jnp.float32)  # W_f (unused in forward)
    return dict(w1=w1, b1=b1, w2=w2, b2=b2, wh=wh, bh=bh, wp=wp, bp=bp, w_f=w_f)


if __name__ == "__main__":
    # Small, module-consistent shapes.
    N_X, N_Y = 8, 8            # nodes in the two graphs
    INPUT_SHAPE = 16
    HIDDEN = 32
    OUTPUT_SHAPE = 8
    GAMMA = 0.99               # unused in forward

    key = jax.random.PRNGKey(0)
    k_adj_x, k_adj_y, k_emb_x, k_emb_y, k_params = jax.random.split(key, 5)

    # Deterministic 0/1 symmetric adjacency matrices (LongTensor semantics).
    ax = (jax.random.uniform(k_adj_x, (N_X, N_X)) > 0.5).astype(jnp.int32)
    ax = jnp.maximum(ax, ax.T)
    ay = (jax.random.uniform(k_adj_y, (N_Y, N_Y)) > 0.5).astype(jnp.int32)
    ay = jnp.maximum(ay, ay.T)

    first_embeddings = jax.random.normal(k_emb_x, (N_X, INPUT_SHAPE), jnp.float32)
    second_embeddings = jax.random.normal(k_emb_y, (N_Y, INPUT_SHAPE), jnp.float32)
    state = jnp.array([2, 5], dtype=jnp.int32)   # (index_x, index_y)

    params = init_agent_params(k_params, INPUT_SHAPE, HIDDEN, OUTPUT_SHAPE)

    policy = agent_forward(params, ax, ay,
                           first_embeddings, second_embeddings, state)
    policy = jax.block_until_ready(policy)

    assert policy.shape == (1, 2)
    assert bool(jnp.all(jnp.isfinite(policy)))
    # approx-reciprocal softmax denominator -> allow a small sum-to-1 slack
    assert abs(float(jnp.sum(policy)) - 1.0) < 1e-2
    print("KERNEL_OK")
</pallas_src>

<mosaic_0001>
module attributes {stable_mosaic.version = 11 : i64} {
  func.func @fused_agent_kernel(%arg0: memref<16x16xf32, #tpu.memory_space<vmem>>, %arg1: memref<2x16xf32, #tpu.memory_space<vmem>>, %arg2: memref<16x16xf32, #tpu.memory_space<vmem>>, %arg3: memref<16x32xf32, #tpu.memory_space<vmem>>, %arg4: memref<32x8xf32, #tpu.memory_space<vmem>>, %arg5: memref<16x128xf32, #tpu.memory_space<vmem>>, %arg6: memref<128x128xf32, #tpu.memory_space<vmem>>, %arg7: memref<4x128xf32, #tpu.memory_space<vmem>>, %arg8: memref<1x128xf32, #tpu.memory_space<vmem>>) attributes {dimension_semantics = [], scalar_prefetch = 0 : i64, scratch_operands = 0 : i64, tpu.core_type = #tpu.core_type<tc>} {
    %c0 = arith.constant 0 : index
    %c0_0 = arith.constant 0 : index
    %0 = vector.load %arg7[%c0, %c0_0] : memref<4x128xf32, #tpu.memory_space<vmem>>, vector<4x128xf32>
    %1 = vector.extract_strided_slice %0 {offsets = [0, 0], sizes = [1, 32], strides = [1, 1]} : vector<4x128xf32> to vector<1x32xf32>
    %2 = vector.extract_strided_slice %0 {offsets = [1, 0], sizes = [1, 8], strides = [1, 1]} : vector<4x128xf32> to vector<1x8xf32>
    %3 = vector.extract_strided_slice %0 {offsets = [2, 0], sizes = [1, 128], strides = [1, 1]} : vector<4x128xf32> to vector<1x128xf32>
    %4 = vector.extract_strided_slice %0 {offsets = [3, 0], sizes = [1, 128], strides = [1, 1]} : vector<4x128xf32> to vector<1x128xf32>
    %c0_1 = arith.constant 0 : index
    %c0_2 = arith.constant 0 : index
    %5 = vector.load %arg0[%c0_1, %c0_2] : memref<16x16xf32, #tpu.memory_space<vmem>>, vector<16x16xf32>
    %c0_3 = arith.constant 0 : index
    %c0_4 = arith.constant 0 : index
    %6 = vector.load %arg2[%c0_3, %c0_4] : memref<16x16xf32, #tpu.memory_space<vmem>>, vector<16x16xf32>
    %cst = arith.constant dense<0.000000e+00> : vector<16x16xf32>
    %7 = tpu.matmul %5, %6, %cst {dimension_numbers = #tpu.dot_dimension_numbers<[1], [0], [0], [1], [0, 0, 1, 1], [], []>} : vector<16x16xf32>, vector<16x16xf32>, vector<16x16xf32> -> vector<16x16xf32>
    %c0_5 = arith.constant 0 : index
    %c0_6 = arith.constant 0 : index
    %8 = vector.load %arg3[%c0_5, %c0_6] : memref<16x32xf32, #tpu.memory_space<vmem>>, vector<16x32xf32>
    %cst_7 = arith.constant dense<0.000000e+00> : vector<16x32xf32>
    %9 = tpu.matmul %7, %8, %cst_7 {dimension_numbers = #tpu.dot_dimension_numbers<[1], [0], [0], [1], [0, 0, 1, 1], [], []>} : vector<16x16xf32>, vector<16x32xf32>, vector<16x32xf32> -> vector<16x32xf32>
    %10 = vector.broadcast %1 : vector<1x32xf32> to vector<16x32xf32>
    %11 = arith.addf %9, %10 : vector<16x32xf32>
    %12 = arith.negf %11 : vector<16x32xf32>
    %13 = math.exp %12 : vector<16x32xf32>
    %cst_8 = arith.constant 1.000000e+00 : f32
    %14 = vector.broadcast %cst_8 : f32 to vector<16x32xf32>
    %15 = arith.addf %14, %13 : vector<16x32xf32>
    %16 = arith.divf %14, %15 : vector<16x32xf32>
    %c0_9 = arith.constant 0 : index
    %c0_10 = arith.constant 0 : index
    %17 = vector.load %arg1[%c0_9, %c0_10] : memref<2x16xf32, #tpu.memory_space<vmem>>, vector<2x16xf32>
    %cst_11 = arith.constant dense<0.000000e+00> : vector<2x32xf32>
    %18 = tpu.matmul %17, %16, %cst_11 {dimension_numbers = #tpu.dot_dimension_numbers<[1], [0], [0], [1], [0, 0, 1, 1], [], []>} : vector<2x16xf32>, vector<16x32xf32>, vector<2x32xf32> -> vector<2x32xf32>
    %c0_12 = arith.constant 0 : index
    %c0_13 = arith.constant 0 : index
    %19 = vector.load %arg4[%c0_12, %c0_13] : memref<32x8xf32, #tpu.memory_space<vmem>>, vector<32x8xf32>
    %cst_14 = arith.constant dense<0.000000e+00> : vector<2x8xf32>
    %20 = tpu.matmul %18, %19, %cst_14 {dimension_numbers = #tpu.dot_dimension_numbers<[1], [0], [0], [1], [0, 0, 1, 1], [], []>} : vector<2x32xf32>, vector<32x8xf32>, vector<2x8xf32> -> vector<2x8xf32>
    %21 = vector.broadcast %2 : vector<1x8xf32> to vector<2x8xf32>
    %22 = arith.addf %20, %21 : vector<2x8xf32>
    %23 = arith.negf %22 : vector<2x8xf32>
    %24 = math.exp %23 : vector<2x8xf32>
    %cst_15 = arith.constant 1.000000e+00 : f32
    %25 = vector.broadcast %cst_15 : f32 to vector<2x8xf32>
    %26 = arith.addf %25, %24 : vector<2x8xf32>
    %27 = arith.divf %25, %26 : vector<2x8xf32>
    %c0_16 = arith.constant 0 : index
    %c0_17 = arith.constant 0 : index
    %28 = vector.load %arg5[%c0_16, %c0_17] : memref<16x128xf32, #tpu.memory_space<vmem>>, vector<16x128xf32>
    %29 = vector.extract_strided_slice %27 {offsets = [0, 0], sizes = [1, 8], strides = [1, 1]} : vector<2x8xf32> to vector<1x8xf32>
    %30 = vector.extract_strided_slice %28 {offsets = [0, 0], sizes = [8, 128], strides = [1, 1]} : vector<16x128xf32> to vector<8x128xf32>
    %cst_18 = arith.constant dense<0.000000e+00> : vector<1x128xf32>
    %31 = tpu.matmul %29, %30, %cst_18 {dimension_numbers = #tpu.dot_dimension_numbers<[1], [0], [0], [1], [0, 0, 1, 1], [], []>} : vector<1x8xf32>, vector<8x128xf32>, vector<1x128xf32> -> vector<1x128xf32>
    %32 = vector.extract_strided_slice %27 {offsets = [1, 0], sizes = [1, 8], strides = [1, 1]} : vector<2x8xf32> to vector<1x8xf32>
    %33 = vector.extract_strided_slice %28 {offsets = [8, 0], sizes = [8, 128], strides = [1, 1]} : vector<16x128xf32> to vector<8x128xf32>
    %cst_19 = arith.constant dense<0.000000e+00> : vector<1x128xf32>
    %34 = tpu.matmul %32, %33, %cst_19 {dimension_numbers = #tpu.dot_dimension_numbers<[1], [0], [0], [1], [0, 0, 1, 1], [], []>} : vector<1x8xf32>, vector<8x128xf32>, vector<1x128xf32> -> vector<1x128xf32>
    %35 = arith.addf %31, %34 : vector<1x128xf32>
    %36 = arith.addf %35, %3 : vector<1x128xf32>
    %37 = arith.negf %36 : vector<1x128xf32>
    %38 = math.exp %37 : vector<1x128xf32>
    %cst_20 = arith.constant 1.000000e+00 : f32
    %39 = vector.broadcast %cst_20 : f32 to vector<1x128xf32>
    %40 = arith.addf %39, %38 : vector<1x128xf32>
    %41 = arith.divf %39, %40 : vector<1x128xf32>
    %c0_21 = arith.constant 0 : index
    %c0_22 = arith.constant 0 : index
    %42 = vector.load %arg6[%c0_21, %c0_22] : memref<128x128xf32, #tpu.memory_space<vmem>>, vector<128x128xf32>
    %cst_23 = arith.constant dense<0.000000e+00> : vector<1x128xf32>
    %43 = tpu.matmul %41, %42, %cst_23 {dimension_numbers = #tpu.dot_dimension_numbers<[1], [0], [0], [1], [0, 0, 1, 1], [], []>} : vector<1x128xf32>, vector<128x128xf32>, vector<1x128xf32> -> vector<1x128xf32>
    %44 = arith.addf %43, %4 : vector<1x128xf32>
    %45 = tpu.iota {dimensions = array<i32: 1>} : vector<1x128xi32>
    %c2_i32 = arith.constant 2 : i32
    %46 = vector.broadcast %c2_i32 : i32 to vector<1x128xi32>
    %47 = arith.cmpi slt, %45, %46 : vector<1x128xi32>
    %cst_24 = arith.constant -1.000000e+30 : f32
    %48 = vector.broadcast %cst_24 : f32 to vector<1x128xf32>
    %49 = arith.select %47, %44, %48 : vector<1x128xi1>, vector<1x128xf32>
    %cst_25 = arith.constant dense<0xFF800000> : vector<1xf32>
    %50 = vector.multi_reduction <maximumf>, %49, %cst_25 [1] : vector<1x128xf32> to vector<1xf32>
    %51 = vector.shape_cast %50 : vector<1xf32> to vector<1x1xf32>
    %52 = vector.broadcast %51 : vector<1x1xf32> to vector<1x128xf32>
    %53 = arith.subf %49, %52 : vector<1x128xf32>
    %54 = math.exp %53 : vector<1x128xf32>
    %cst_26 = arith.constant dense<0.000000e+00> : vector<1xf32>
    %55 = vector.multi_reduction <add>, %54, %cst_26 [1] : vector<1x128xf32> to vector<1xf32>
    %56 = vector.shape_cast %55 : vector<1xf32> to vector<1x1xf32>
    %57 = tpu.reciprocal %56 {approx = true} : vector<1x1xf32> -> vector<1x1xf32>
    %58 = vector.broadcast %57 : vector<1x1xf32> to vector<1x128xf32>
    %59 = arith.mulf %54, %58 : vector<1x128xf32>
    %c0_27 = arith.constant 0 : index
    %c0_28 = arith.constant 0 : index
    %60 = vector.load %arg8[%c0_27, %c0_28] : memref<1x128xf32, #tpu.memory_space<vmem>>, vector<1x128xf32>
    tpu.vector_store %arg8[%c0_27, %c0_28], %59 {strides = array<i32>} : memref<1x128xf32, #tpu.memory_space<vmem>>, vector<1x128xf32>,
    return
  }
}

</mosaic_0001>

<llo_original>
// kernel: agent_forward.1
$region0: #{agent_forward.1}
  #allocation0 [shape = 'u32[]', space=smem, size = 0x4, offset = 0x4, fixed_abs, tag = 'smem constant byte address 0x4 - core index']
  #allocation1 [shape = 'u32[144,128]{1,0:T(1,128)}', space=vmem, size = 0x12000, scoped, tag = 'internal scratch']
  %s0 = inlined_call_operand.vmem [shape: f32[16,16], index: 0, kind: input, shape index: {}]
  %s1 = inlined_call_operand.vmem [shape: f32[2,16], index: 1, kind: input, shape index: {}]
  %s2 = inlined_call_operand.vmem [shape: f32[16,16], index: 2, kind: input, shape index: {}]
  %s3 = inlined_call_operand.vmem [shape: f32[16,32], index: 3, kind: input, shape index: {}]
  %s4 = inlined_call_operand.vmem [shape: f32[32,8], index: 4, kind: input, shape index: {}]
  %s5 = inlined_call_operand.vmem [shape: f32[16,128], index: 5, kind: input, shape index: {}]
  %s6 = inlined_call_operand.vmem [shape: f32[128,128], index: 6, kind: input, shape index: {}]
  %s7 = inlined_call_operand.vmem [shape: f32[4,128], index: 7, kind: input, shape index: {}]
  %s8 = inlined_call_operand.hbm [shape: f32[1,128], index: 8, kind: output, shape index: {}]
  %s9 = sld [smem:[#allocation0]]
  $region42: #{agent_forward.1} parent=0
    _
  %s11 = ssub.s32 1, %s9
  %s12 = scalar_select 0, %s11, %s9
  $region1: #{agent_forward.1} parent=0
    #allocation2 [shape = 'u8[512]{0}', space=vmem, size = 0x400, scoped, tag = 'output window, operand 0, single buffered']
    #allocation3 [shape = 's32[1]{0}', space=sflag, size = 0x4, scoped, tag = 'scoped memory for agent_forward.1']
    %13 = vsyncpa [#allocation3], 0
    // Predicated region
    $region2: #{agent_forward.1} parent=1 // pred_check
      _
    $region3: #{agent_forward.1} parent=1 // pred_check_branch
      %15 = sbr.rel (0) target = $region5
    $region4: #{agent_forward.1} parent=1 // pred_region
      _
    $region5: #{agent_forward.1} parent=1 // pred_fallthru
      _
    // Predicated region
    $region6: #{agent_forward.1} parent=1 // pred_check
      _
    $region7: #{agent_forward.1} parent=1 // pred_check_branch
      %17 = sbr.rel (0) target = $region9
    $region8: #{agent_forward.1} parent=1 // pred_region
      _
    $region9: #{agent_forward.1} parent=1 // pred_fallthru
      _
    // Predicated region
    $region10: #{agent_forward.1} parent=1 // pred_check
      _
    $region11: #{agent_forward.1} parent=1 // pred_check_branch
      %19 = sbr.rel (0) target = $region13
    $region12: #{agent_forward.1} parent=1 // pred_region
      _
    $region13: #{agent_forward.1} parent=1 // pred_fallthru
      _
    // Predicated region
    $region14: #{agent_forward.1} parent=1 // pred_check
      _
    $region15: #{agent_forward.1} parent=1 // pred_check_branch
      %21 = sbr.rel (0) target = $region17
    $region16: #{agent_forward.1} parent=1 // pred_region
      _
    $region17: #{agent_forward.1} parent=1 // pred_fallthru
      _
    // Predicated region
    $region18: #{agent_forward.1} parent=1 // pred_check
      _
    $region19: #{agent_forward.1} parent=1 // pred_check_branch
      %23 = sbr.rel (0) target = $region21
    $region20: #{agent_forward.1} parent=1 // pred_region
      _
    $region21: #{agent_forward.1} parent=1 // pred_fallthru
      _
    // Predicated region
    $region22: #{agent_forward.1} parent=1 // pred_check
      _
    $region23: #{agent_forward.1} parent=1 // pred_check_branch
      %25 = sbr.rel (0) target = $region25
    $region24: #{agent_forward.1} parent=1 // pred_region
      _
    $region25: #{agent_forward.1} parent=1 // pred_fallthru
      _
    // Predicated region
    $region26: #{agent_forward.1} parent=1 // pred_check
      _
    $region27: #{agent_forward.1} parent=1 // pred_check_branch
      %27 = sbr.rel (0) target = $region29
    $region28: #{agent_forward.1} parent=1 // pred_region
      _
    $region29: #{agent_forward.1} parent=1 // pred_fallthru
      _
    // Predicated region
    $region30: #{agent_forward.1} parent=1 // pred_check
      _
    $region31: #{agent_forward.1} parent=1 // pred_check_branch
      %29 = sbr.rel (0) target = $region33
    $region32: #{agent_forward.1} parent=1 // pred_region
      _
    $region33: #{agent_forward.1} parent=1 // pred_fallthru
      _
    %v30 = vld [vmem:[%s7] sm:$0xf]
    %v31 = vld [vmem:[%s0] sm:$0xff]
    %v32 = vld [vmem:[%s0 + $0x8] sm:$0xff]
    %v33 = vld [vmem:[%s2] sm:$0xff]
    %v34 = vld [vmem:[%s2 + $0x8] sm:$0xff]
    %vm35 = vcmask 130048
    %v37 = vsel %vm35, %v31, 0
    %v40 = vsel %vm35, %v32, 0
    %42 = vmatprep.subr.mxu0 0.0
    %43 = vmatpush1.msra.mxu0 0.0
    %44 = vmatprep.subr.mxu0 0.0
    %45 = vmatpush1.msra.mxu0 0.0
    %46 = vmatprep.subr.mxu0 0.0
    %47 = vmatpush1.msra.mxu0 0.0
    %48 = vmatprep.subr.mxu0 0.0
    %49 = vmatpush1.msra.mxu0 0.0
    %50 = vmatprep.subr.mxu0 0.0
    %51 = vmatpush1.msra.mxu0 0.0
    %52 = vmatprep.subr.mxu0 0.0
    %53 = vmatpush1.msra.mxu0 0.0
    %54 = vmatprep.subr.mxu0 0.0
    %55 = vmatpush1.msra.mxu0 0.0
    %56 = vmatprep.subr.mxu0 0.0
    %57 = vmatpush1.msra.mxu0 0.0
    %58 = vmatprep.subr.mxu0 0.0
    %59 = vmatpush1.msra.mxu0 0.0
    %60 = vmatprep.subr.mxu0 0.0
    %61 = vmatpush1.msra.mxu0 0.0
    %62 = vmatprep.subr.mxu0 0.0
    %63 = vmatpush1.msra.mxu0 0.0
    %64 = vmatprep.subr.mxu0 0.0
    %65 = vmatpush1.msra.mxu0 0.0
    %66 = vmatprep.subr.mxu0 0.0
    %67 = vmatpush1.msra.mxu0 0.0
    %68 = vmatprep.subr.mxu0 0.0
    %69 = vmatpush1.msra.mxu0 0.0
    %70 = vmatprep.subr.mxu0 0.0
    %71 = vmatpush1.msra.mxu0 %v34
    %72 = vmatprep.subr.mxu0 0.0
    %73 = vmatpush1.msra.mxu0 %v33
    %74 = vmatprep.subr.mxu0 0.0
    %75 = vmatpush2.msra.mxu0 0.0
    %76 = vmatprep.subr.mxu0 0.0
    %77 = vmatpush2.msra.mxu0 0.0
    %78 = vmatprep.subr.mxu0 0.0
    %79 = vmatpush2.msra.mxu0 0.0
    %80 = vmatprep.subr.mxu0 0.0
    %81 = vmatpush2.msra.mxu0 0.0
    %82 = vmatprep.subr.mxu0 0.0
    %83 = vmatpush2.msra.mxu0 0.0
    %84 = vmatprep.subr.mxu0 0.0
    %85 = vmatpush2.msra.mxu0 0.0
    %86 = vmatprep.subr.mxu0 0.0
    %87 = vmatpush2.msra.mxu0 0.0
    %88 = vmatprep.subr.mxu0 0.0
    %89 = vmatpush2.msra.mxu0 0.0
    %90 = vmatprep.subr.mxu0 0.0
    %91 = vmatpush2.msra.mxu0 0.0
    %92 = vmatprep.subr.mxu0 0.0
    %93 = vmatpush2.msra.mxu0 0.0
    %94 = vmatprep.subr.mxu0 0.0
    %95 = vmatpush2.msra.mxu0 0.0
    %96 = vmatprep.subr.mxu0 0.0
    %97 = vmatpush2.msra.mxu0 0.0
    %98 = vmatprep.subr.mxu0 0.0
    %99 = vmatpush2.msra.mxu0 0.0
    %100 = vmatprep.subr.mxu0 0.0
    %101 = vmatpush2.msra.mxu0 0.0
    %102 = vmatprep.subr.mxu0 0.0
    %103 = vmatpush2.msra.mxu0 0.0
    %104 = vmatprep.subr.mxu0 0.0
    %105 = vmatpush2.msra.mxu0 0.0
    %106 = vmatprep.mubr.f32.mxu0 0.0
    %107 = vmatmul.mubr.f32.gmra.mxu0 %v37
    %v108 = vpop.f32.mrf.mxu0
    %v109 = vadd.f32 0.0, %v108
    %v110 = vpop.f32.mrf.mxu0
    %111 = vmatprep.mubr.f32.mxu0 0.0
    %112 = vmatmul.mubr.f32.gmra.mxu0 %v40
    %v113 = vpop.f32.mrf.mxu0
    %v114 = vadd.f32 0.0, %v113
    %v115 = vpop.f32.mrf.mxu0
    %116 = vdwg.mxu0
    %v117 = vld [vmem:[%s3] sm:$0xff]
    %v118 = vld [vmem:[%s3 + $0x8] sm:$0xff]
    %v119 = vlaneseq
    %v120 = vshrl.u32 %v119, 7
    %v121 = vsub.s32 0, %v120
    %v122 = vrot.slane %v30, %v121
    %v124 = vsel %vm35, %v109, 0
    %v127 = vsel %vm35, %v114, 0
    %129 = vmatprep.subr.mxu0 0.0
    %130 = vmatpush1.msra.mxu0 0.0
    %131 = vmatprep.subr.mxu0 0.0
    %132 = vmatpush1.msra.mxu0 0.0
    %133 = vmatprep.subr.mxu0 0.0
    %134 = vmatpush1.msra.mxu0 0.0
    %135 = vmatprep.subr.mxu0 0.0
    %136 = vmatpush1.msra.mxu0 0.0
    %137 = vmatprep.subr.mxu0 0.0
    %138 = vmatpush1.msra.mxu0 0.0
    %139 = vmatprep.subr.mxu0 0.0
    %140 = vmatpush1.msra.mxu0 0.0
    %141 = vmatprep.subr.mxu0 0.0
    %142 = vmatpush1.msra.mxu0 0.0
    %143 = vmatprep.subr.mxu0 0.0
    %144 = vmatpush1.msra.mxu0 0.0
    %145 = vmatprep.subr.mxu0 0.0
    %146 = vmatpush1.msra.mxu0 0.0
    %147 = vmatprep.subr.mxu0 0.0
    %148 = vmatpush1.msra.mxu0 0.0
    %149 = vmatprep.subr.mxu0 0.0
    %150 = vmatpush1.msra.mxu0 0.0
    %151 = vmatprep.subr.mxu0 0.0
    %152 = vmatpush1.msra.mxu0 0.0
    %153 = vmatprep.subr.mxu0 0.0
    %154 = vmatpush1.msra.mxu0 0.0
    %155 = vmatprep.subr.mxu0 0.0
    %156 = vmatpush1.msra.mxu0 0.0
    %157 = vmatprep.subr.mxu0 0.0
    %158 = vmatpush1.msra.mxu0 %v118
    %159 = vmatprep.subr.mxu0 0.0
    %160 = vmatpush1.msra.mxu0 %v117
    %161 = vmatprep.subr.mxu0 0.0
    %162 = vmatpush2.msra.mxu0 0.0
    %163 = vmatprep.subr.mxu0 0.0
    %164 = vmatpush2.msra.mxu0 0.0
    %165 = vmatprep.subr.mxu0 0.0
    %166 = vmatpush2.msra.mxu0 0.0
    %167 = vmatprep.subr.mxu0 0.0
    %168 = vmatpush2.msra.mxu0 0.0
    %169 = vmatprep.subr.mxu0 0.0
    %170 = vmatpush2.msra.mxu0 0.0
    %171 = vmatprep.subr.mxu0 0.0
    %172 = vmatpush2.msra.mxu0 0.0
    %173 = vmatprep.subr.mxu0 0.0
    %174 = vmatpush2.msra.mxu0 0.0
    %175 = vmatprep.subr.mxu0 0.0
    %176 = vmatpush2.msra.mxu0 0.0
    %177 = vmatprep.subr.mxu0 0.0
    %178 = vmatpush2.msra.mxu0 0.0
    %179 = vmatprep.subr.mxu0 0.0
    %180 = vmatpush2.msra.mxu0 0.0
    %181 = vmatprep.subr.mxu0 0.0
    %182 = vmatpush2.msra.mxu0 0.0
    %183 = vmatprep.subr.mxu0 0.0
    %184 = vmatpush2.msra.mxu0 0.0
    %185 = vmatprep.subr.mxu0 0.0
    %186 = vmatpush2.msra.mxu0 0.0
    %187 = vmatprep.subr.mxu0 0.0
    %188 = vmatpush2.msra.mxu0 0.0
    %189 = vmatprep.subr.mxu0 0.0
    %190 = vmatpush2.msra.mxu0 0.0
    %191 = vmatprep.subr.mxu0 0.0
    %192 = vmatpush2.msra.mxu0 0.0
    %193 = vmatprep.mubr.f32.mxu0 0.0
    %194 = vmatmul.mubr.f32.gmra.mxu0 %v124
    %v195 = vpop.f32.mrf.mxu0
    %v196 = vadd.f32 %v122, %v195
    %v197 = vpop.f32.mrf.mxu0
    %198 = vmatprep.mubr.f32.mxu0 0.0
    %199 = vmatmul.mubr.f32.gmra.mxu0 %v127
    %v200 = vpop.f32.mrf.mxu0
    %v201 = vadd.f32 %v122, %v200
    %v202 = vpop.f32.mrf.mxu0
    %203 = vdwg.mxu0
    %v204 = vxor.u32 %v196, 2147483648
    %v205 = vxor.u32 %v201, 2147483648
    %v206 = vmul.f32 %v204, 1.442695
    %v207 = vpow.pop %v206
    %v208 = vmul.f32 %v205, 1.442695
    %v209 = vpow.pop %v208
    %v210 = vadd.f32 %v207, 1.0
    %v211 = vadd.f32 %v209, 1.0
    %v212 = vrcp.pop %v210
    %v213 = vmul.f32 1.0, %v212
    %v214 = vrcp.pop %v211
    %v215 = vmul.f32 1.0, %v214
    %v216 = vld [vmem:[%s1] sm:$0x3]
    %v218 = vsel %vm35, %v216, 0
    %220 = vmatprep.subr.mxu0 0.0
    %221 = vmatpush1.msra.mxu0 0.0
    %222 = vmatprep.subr.mxu0 0.0
    %223 = vmatpush1.msra.mxu0 0.0
    %224 = vmatprep.subr.mxu0 0.0
    %225 = vmatpush1.msra.mxu0 0.0
    %226 = vmatprep.subr.mxu0 0.0
    %227 = vmatpush1.msra.mxu0 0.0
    %228 = vmatprep.subr.mxu0 0.0
    %229 = vmatpush1.msra.mxu0 0.0
    %230 = vmatprep.subr.mxu0 0.0
    %231 = vmatpush1.msra.mxu0 0.0
    %232 = vmatprep.subr.mxu0 0.0
    %233 = vmatpush1.msra.mxu0 0.0
    %234 = vmatprep.subr.mxu0 0.0
    %235 = vmatpush1.msra.mxu0 0.0
    %236 = vmatprep.subr.mxu0 0.0
    %237 = vmatpush1.msra.mxu0 0.0
    %238 = vmatprep.subr.mxu0 0.0
    %239 = vmatpush1.msra.mxu0 0.0
    %240 = vmatprep.subr.mxu0 0.0
    %241 = vmatpush1.msra.mxu0 0.0
    %242 = vmatprep.subr.mxu0 0.0
    %243 = vmatpush1.msra.mxu0 0.0
    %244 = vmatprep.subr.mxu0 0.0
    %245 = vmatpush1.msra.mxu0 0.0
    %246 = vmatprep.subr.mxu0 0.0
    %247 = vmatpush1.msra.mxu0 0.0
    %248 = vmatprep.subr.mxu0 0.0
    %249 = vmatpush1.msra.mxu0 %v215
    %250 = vmatprep.subr.mxu0 0.0
    %251 = vmatpush1.msra.mxu0 %v213
    %252 = vmatprep.subr.mxu0 0.0
    %253 = vmatpush2.msra.mxu0 0.0
    %254 = vmatprep.subr.mxu0 0.0
    %255 = vmatpush2.msra.mxu0 0.0
    %256 = vmatprep.subr.mxu0 0.0
    %257 = vmatpush2.msra.mxu0 0.0
    %258 = vmatprep.subr.mxu0 0.0
    %259 = vmatpush2.msra.mxu0 0.0
    %260 = vmatprep.subr.mxu0 0.0
    %261 = vmatpush2.msra.mxu0 0.0
    %262 = vmatprep.subr.mxu0 0.0
    %263 = vmatpush2.msra.mxu0 0.0
    %264 = vmatprep.subr.mxu0 0.0
    %265 = vmatpush2.msra.mxu0 0.0
    %266 = vmatprep.subr.mxu0 0.0
    %267 = vmatpush2.msra.mxu0 0.0
    %268 = vmatprep.subr.mxu0 0.0
    %269 = vmatpush2.msra.mxu0 0.0
    %270 = vmatprep.subr.mxu0 0.0
    %271 = vmatpush2.msra.mxu0 0.0
    %272 = vmatprep.subr.mxu0 0.0
    %273 = vmatpush2.msra.mxu0 0.0
    %274 = vmatprep.subr.mxu0 0.0
    %275 = vmatpush2.msra.mxu0 0.0
    %276 = vmatprep.subr.mxu0 0.0
    %277 = vmatpush2.msra.mxu0 0.0
    %278 = vmatprep.subr.mxu0 0.0
    %279 = vmatpush2.msra.mxu0 0.0
    %280 = vmatprep.subr.mxu0 0.0
    %281 = vmatpush2.msra.mxu0 0.0
    %282 = vmatprep.subr.mxu0 0.0
    %283 = vmatpush2.msra.mxu0 0.0
    %284 = vmatprep.mubr.f32.mxu0 0.0
    %285 = vmatmul.mubr.f32.gmra.mxu0 %v218
    %v286 = vpop.f32.mrf.mxu0
    %v287 = vadd.f32 0.0, %v286
    %v288 = vpop.f32.mrf.mxu0
    %289 = vdwg.mxu0
    %v290 = vld [vmem:[%s4] sm:$0xff]
    %v291 = vld [vmem:[%s4 + $0x8] sm:$0xff]
    %v292 = vld [vmem:[%s4 + $0x10] sm:$0xff]
    %v293 = vld [vmem:[%s4 + $0x18] sm:$0xff]
    %v294 = vlaneseq
    %v295 = vshrl.u32 %v294, 7
    %v296 = vsub.s32 1, %v295
    %v297 = vrot.slane %v30, %v296
    %vm298 = vcmask 261120
    %v300 = vsel %vm298, %v287, 0
    %302 = vmatprep.subr.mxu0 0.0
    %303 = vmatpush1.msra.mxu0 0.0
    %304 = vmatprep.subr.mxu0 0.0
    %305 = vmatpush1.msra.mxu0 0.0
    %306 = vmatprep.subr.mxu0 0.0
    %307 = vmatpush1.msra.mxu0 0.0
    %308 = vmatprep.subr.mxu0 0.0
    %309 = vmatpush1.msra.mxu0 0.0
    %310 = vmatprep.subr.mxu0 0.0
    %311 = vmatpush1.msra.mxu0 0.0
    %312 = vmatprep.subr.mxu0 0.0
    %313 = vmatpush1.msra.mxu0 0.0
    %314 = vmatprep.subr.mxu0 0.0
    %315 = vmatpush1.msra.mxu0 0.0
    %316 = vmatprep.subr.mxu0 0.0
    %317 = vmatpush1.msra.mxu0 0.0
    %318 = vmatprep.subr.mxu0 0.0
    %319 = vmatpush1.msra.mxu0 0.0
    %320 = vmatprep.subr.mxu0 0.0
    %321 = vmatpush1.msra.mxu0 0.0
    %322 = vmatprep.subr.mxu0 0.0
    %323 = vmatpush1.msra.mxu0 0.0
    %324 = vmatprep.subr.mxu0 0.0
    %325 = vmatpush1.msra.mxu0 0.0
    %326 = vmatprep.subr.mxu0 0.0
    %327 = vmatpush1.msra.mxu0 %v293
    %328 = vmatprep.subr.mxu0 0.0
    %329 = vmatpush1.msra.mxu0 %v292
    %330 = vmatprep.subr.mxu0 0.0
    %331 = vmatpush1.msra.mxu0 %v291
    %332 = vmatprep.subr.mxu0 0.0
    %333 = vmatpush1.msra.mxu0 %v290
    %334 = vmatprep.subr.mxu0 0.0
    %335 = vmatpush2.msra.mxu0 0.0
    %336 = vmatprep.subr.mxu0 0.0
    %337 = vmatpush2.msra.mxu0 0.0
    %338 = vmatprep.subr.mxu0 0.0
    %339 = vmatpush2.msra.mxu0 0.0
    %340 = vmatprep.subr.mxu0 0.0
    %341 = vmatpush2.msra.mxu0 0.0
    %342 = vmatprep.subr.mxu0 0.0
    %343 = vmatpush2.msra.mxu0 0.0
    %344 = vmatprep.subr.mxu0 0.0
    %345 = vmatpush2.msra.mxu0 0.0
    %346 = vmatprep.subr.mxu0 0.0
    %347 = vmatpush2.msra.mxu0 0.0
    %348 = vmatprep.subr.mxu0 0.0
    %349 = vmatpush2.msra.mxu0 0.0
    %350 = vmatprep.subr.mxu0 0.0
    %351 = vmatpush2.msra.mxu0 0.0
    %352 = vmatprep.subr.mxu0 0.0
    %353 = vmatpush2.msra.mxu0 0.0
    %354 = vmatprep.subr.mxu0 0.0
    %355 = vmatpush2.msra.mxu0 0.0
    %356 = vmatprep.subr.mxu0 0.0
    %357 = vmatpush2.msra.mxu0 0.0
    %358 = vmatprep.subr.mxu0 0.0
    %359 = vmatpush2.msra.mxu0 0.0
    %360 = vmatprep.subr.mxu0 0.0
    %361 = vmatpush2.msra.mxu0 0.0
    %362 = vmatprep.subr.mxu0 0.0
    %363 = vmatpush2.msra.mxu0 0.0
    %364 = vmatprep.subr.mxu0 0.0
    %365 = vmatpush2.msra.mxu0 0.0
    %366 = vmatprep.mubr.f32.mxu0 0.0
    %367 = vmatmul.mubr.f32.gmra.mxu0 %v300
    %v368 = vpop.f32.mrf.mxu0
    %v369 = vadd.f32 %v297, %v368
    %v370 = vpop.f32.mrf.mxu0
    %371 = vdwg.mxu0
    %v372 = vxor.u32 %v369, 2147483648
    %v373 = vmul.f32 %v372, 1.442695
    %v374 = vpow.pop %v373
    %v375 = vadd.f32 %v374, 1.0
    %v376 = vrcp.pop %v375
    %v377 = vmul.f32 1.0, %v376
    %v378 = vld [vmem:[%s5] sm:$0xff]
    %v379 = vld [vmem:[%s5 + $0x8] sm:$0xff]
    %v381 = vrot.slane %v377, 1
    %vm382 = vcmask 64512
    %v383 = vsel %vm382, %v381, 0
    %385 = vmatprep.subr.mxu0 0.0
    %386 = vmatpush1.msra.mxu0 0.0
    %387 = vmatprep.subr.mxu0 0.0
    %388 = vmatpush1.msra.mxu0 0.0
    %389 = vmatprep.subr.mxu0 0.0
    %390 = vmatpush1.msra.mxu0 0.0
    %391 = vmatprep.subr.mxu0 0.0
    %392 = vmatpush1.msra.mxu0 0.0
    %393 = vmatprep.subr.mxu0 0.0
    %394 = vmatpush1.msra.mxu0 0.0
    %395 = vmatprep.subr.mxu0 0.0
    %396 = vmatpush1.msra.mxu0 0.0
    %397 = vmatprep.subr.mxu0 0.0
    %398 = vmatpush1.msra.mxu0 0.0
    %399 = vmatprep.subr.mxu0 0.0
    %400 = vmatpush1.msra.mxu0 0.0
    %401 = vmatprep.subr.mxu0 0.0
    %402 = vmatpush1.msra.mxu0 0.0
    %403 = vmatprep.subr.mxu0 0.0
    %404 = vmatpush1.msra.mxu0 0.0
    %405 = vmatprep.subr.mxu0 0.0
    %406 = vmatpush1.msra.mxu0 0.0
    %407 = vmatprep.subr.mxu0 0.0
    %408 = vmatpush1.msra.mxu0 0.0
    %409 = vmatprep.subr.mxu0 0.0
    %410 = vmatpush1.msra.mxu0 0.0
    %411 = vmatprep.subr.mxu0 0.0
    %412 = vmatpush1.msra.mxu0 0.0
    %413 = vmatprep.subr.mxu0 0.0
    %414 = vmatpush1.msra.mxu0 0.0
    %415 = vmatprep.subr.mxu0 0.0
    %416 = vmatpush1.msra.mxu0 %v379
    %417 = vmatprep.subr.mxu0 0.0
    %418 = vmatpush2.msra.mxu0 0.0
    %419 = vmatprep.subr.mxu0 0.0
    %420 = vmatpush2.msra.mxu0 0.0
    %421 = vmatprep.subr.mxu0 0.0
    %422 = vmatpush2.msra.mxu0 0.0
    %423 = vmatprep.subr.mxu0 0.0
    %424 = vmatpush2.msra.mxu0 0.0
    %425 = vmatprep.subr.mxu0 0.0
    %426 = vmatpush2.msra.mxu0 0.0
    %427 = vmatprep.subr.mxu0 0.0
    %428 = vmatpush2.msra.mxu0 0.0
    %429 = vmatprep.subr.mxu0 0.0
    %430 = vmatpush2.msra.mxu0 0.0
    %431 = vmatprep.subr.mxu0 0.0
    %432 = vmatpush2.msra.mxu0 0.0
    %433 = vmatprep.subr.mxu0 0.0
    %434 = vmatpush2.msra.mxu0 0.0
    %435 = vmatprep.subr.mxu0 0.0
    %436 = vmatpush2.msra.mxu0 0.0
    %437 = vmatprep.subr.mxu0 0.0
    %438 = vmatpush2.msra.mxu0 0.0
    %439 = vmatprep.subr.mxu0 0.0
    %440 = vmatpush2.msra.mxu0 0.0
    %441 = vmatprep.subr.mxu0 0.0
    %442 = vmatpush2.msra.mxu0 0.0
    %443 = vmatprep.subr.mxu0 0.0
    %444 = vmatpush2.msra.mxu0 0.0
    %445 = vmatprep.subr.mxu0 0.0
    %446 = vmatpush2.msra.mxu0 0.0
    %447 = vmatprep.subr.mxu0 0.0
    %448 = vmatpush2.msra.mxu0 0.0
    %449 = vmatprep.mubr.f32.mxu0 0.0
    %450 = vmatmul.mubr.f32.gmra.mxu0 %v383
    %v451 = vpop.f32.mrf.mxu0
    %v452 = vadd.f32 0.0, %v451
    %v453 = vpop.f32.mrf.mxu0
    %454 = vdwg.mxu0
    %v455 = vsel %vm382, %v377, 0
    %457 = vmatprep.subr.mxu0 0.0
    %458 = vmatpush1.msra.mxu0 0.0
    %459 = vmatprep.subr.mxu0 0.0
    %460 = vmatpush1.msra.mxu0 0.0
    %461 = vmatprep.subr.mxu0 0.0
    %462 = vmatpush1.msra.mxu0 0.0
    %463 = vmatprep.subr.mxu0 0.0
    %464 = vmatpush1.msra.mxu0 0.0
    %465 = vmatprep.subr.mxu0 0.0
    %466 = vmatpush1.msra.mxu0 0.0
    %467 = vmatprep.subr.mxu0 0.0
    %468 = vmatpush1.msra.mxu0 0.0
    %469 = vmatprep.subr.mxu0 0.0
    %470 = vmatpush1.msra.mxu0 0.0
    %471 = vmatprep.subr.mxu0 0.0
    %472 = vmatpush1.msra.mxu0 0.0
    %473 = vmatprep.subr.mxu0 0.0
    %474 = vmatpush1.msra.mxu0 0.0
    %475 = vmatprep.subr.mxu0 0.0
    %476 = vmatpush1.msra.mxu0 0.0
    %477 = vmatprep.subr.mxu0 0.0
    %478 = vmatpush1.msra.mxu0 0.0
    %479 = vmatprep.subr.mxu0 0.0
    %480 = vmatpush1.msra.mxu0 0.0
    %481 = vmatprep.subr.mxu0 0.0
    %482 = vmatpush1.msra.mxu0 0.0
    %483 = vmatprep.subr.mxu0 0.0
    %484 = vmatpush1.msra.mxu0 0.0
    %485 = vmatprep.subr.mxu0 0.0
    %486 = vmatpush1.msra.mxu0 0.0
    %487 = vmatprep.subr.mxu0 0.0
    %488 = vmatpush1.msra.mxu0 %v378
    %489 = vmatprep.subr.mxu0 0.0
    %490 = vmatpush2.msra.mxu0 0.0
    %491 = vmatprep.subr.mxu0 0.0
    %492 = vmatpush2.msra.mxu0 0.0
    %493 = vmatprep.subr.mxu0 0.0
    %494 = vmatpush2.msra.mxu0 0.0
    %495 = vmatprep.subr.mxu0 0.0
    %496 = vmatpush2.msra.mxu0 0.0
    %497 = vmatprep.subr.mxu0 0.0
    %498 = vmatpush2.msra.mxu0 0.0
    %499 = vmatprep.subr.mxu0 0.0
    %500 = vmatpush2.msra.mxu0 0.0
    %501 = vmatprep.subr.mxu0 0.0
    %502 = vmatpush2.msra.mxu0 0.0
    %503 = vmatprep.subr.mxu0 0.0
    %504 = vmatpush2.msra.mxu0 0.0
    %505 = vmatprep.subr.mxu0 0.0
    %506 = vmatpush2.msra.mxu0 0.0
    %507 = vmatprep.subr.mxu0 0.0
    %508 = vmatpush2.msra.mxu0 0.0
    %509 = vmatprep.subr.mxu0 0.0
    %510 = vmatpush2.msra.mxu0 0.0
    %511 = vmatprep.subr.mxu0 0.0
    %512 = vmatpush2.msra.mxu0 0.0
    %513 = vmatprep.subr.mxu0 0.0
    %514 = vmatpush2.msra.mxu0 0.0
    %515 = vmatprep.subr.mxu0 0.0
    %516 = vmatpush2.msra.mxu0 0.0
    %517 = vmatprep.subr.mxu0 0.0
    %518 = vmatpush2.msra.mxu0 0.0
    %519 = vmatprep.subr.mxu0 0.0
    %520 = vmatpush2.msra.mxu0 0.0
    %521 = vmatprep.mubr.f32.mxu0 0.0
    %522 = vmatmul.mubr.f32.gmra.mxu0 %v455
    %v523 = vpop.f32.mrf.mxu0
    %v524 = vadd.f32 %v452, %v523
    %v525 = vpop.f32.mrf.mxu0
    %526 = vdwg.mxu0
    %v528 = vrot.slane %v30, 2
    %v530 = vadd.f32 %v524, %v528
    %v531 = vxor.u32 %v530, 2147483648
    %v532 = vmul.f32 %v531, 1.442695
    %v533 = vpow.pop %v532
    %v534 = vadd.f32 %v533, 1.0
    %v535 = vrcp.pop %v534
    %v536 = vmul.f32 1.0, %v535
    %v537 = vld [vmem:[%s6] sm:$0xff]
    %v538 = vld [vmem:[%s6 + $0x8] sm:$0xff]
    %v539 = vld [vmem:[%s6 + $0x10] sm:$0xff]
    %v540 = vld [vmem:[%s6 + $0x18] sm:$0xff]
    %v541 = vld [vmem:[%s6 + $0x20] sm:$0xff]
    %v542 = vld [vmem:[%s6 + $0x28] sm:$0xff]
    %v543 = vld [vmem:[%s6 + $0x30] sm:$0xff]
    %v544 = vld [vmem:[%s6 + $0x38] sm:$0xff]
    %v545 = vld [vmem:[%s6 + $0x40] sm:$0xff]
    %v546 = vld [vmem:[%s6 + $0x48] sm:$0xff]
    %v547 = vld [vmem:[%s6 + $0x50] sm:$0xff]
    %v548 = vld [vmem:[%s6 + $0x58] sm:$0xff]
    %v549 = vld [vmem:[%s6 + $0x60] sm:$0xff]
    %v550 = vld [vmem:[%s6 + $0x68] sm:$0xff]
    %v551 = vld [vmem:[%s6 + $0x70] sm:$0xff]
    %v552 = vld [vmem:[%s6 + $0x78] sm:$0xff]
    %v553 = vrot.slane %v30, 3
    %555 = vmatprep.subr.mxu0 0.0
    %556 = vmatpush1.msra.mxu0 %v552
    %557 = vmatprep.subr.mxu0 0.0
    %558 = vmatpush1.msra.mxu0 %v551
    %559 = vmatprep.subr.mxu0 0.0
    %560 = vmatpush1.msra.mxu0 %v550
    %561 = vmatprep.subr.mxu0 0.0
    %562 = vmatpush1.msra.mxu0 %v549
    %563 = vmatprep.subr.mxu0 0.0
    %564 = vmatpush1.msra.mxu0 %v548
    %565 = vmatprep.subr.mxu0 0.0
    %566 = vmatpush1.msra.mxu0 %v547
    %567 = vmatprep.subr.mxu0 0.0
    %568 = vmatpush1.msra.mxu0 %v546
    %569 = vmatprep.subr.mxu0 0.0
    %570 = vmatpush1.msra.mxu0 %v545
    %571 = vmatprep.subr.mxu0 0.0
    %572 = vmatpush1.msra.mxu0 %v544
    %573 = vmatprep.subr.mxu0 0.0
    %574 = vmatpush1.msra.mxu0 %v543
    %575 = vmatprep.subr.mxu0 0.0
    %576 = vmatpush1.msra.mxu0 %v542
    %577 = vmatprep.subr.mxu0 0.0
    %578 = vmatpush1.msra.mxu0 %v541
    %579 = vmatprep.subr.mxu0 0.0
    %580 = vmatpush1.msra.mxu0 %v540
    %581 = vmatprep.subr.mxu0 0.0
    %582 = vmatpush1.msra.mxu0 %v539
    %583 = vmatprep.subr.mxu0 0.0
    %584 = vmatpush1.msra.mxu0 %v538
    %585 = vmatprep.subr.mxu0 0.0
    %586 = vmatpush1.msra.mxu0 %v537
    %587 = vmatprep.subr.mxu0 0.0
    %588 = vmatpush2.msra.mxu0 0.0
    %589 = vmatprep.subr.mxu0 0.0
    %590 = vmatpush2.msra.mxu0 0.0
    %591 = vmatprep.subr.mxu0 0.0
    %592 = vmatpush2.msra.mxu0 0.0
    %593 = vmatprep.subr.mxu0 0.0
    %594 = vmatpush2.msra.mxu0 0.0
    %595 = vmatprep.subr.mxu0 0.0
    %596 = vmatpush2.msra.mxu0 0.0
    %597 = vmatprep.subr.mxu0 0.0
    %598 = vmatpush2.msra.mxu0 0.0
    %599 = vmatprep.subr.mxu0 0.0
    %600 = vmatpush2.msra.mxu0 0.0
    %601 = vmatprep.subr.mxu0 0.0
    %602 = vmatpush2.msra.mxu0 0.0
    %603 = vmatprep.subr.mxu0 0.0
    %604 = vmatpush2.msra.mxu0 0.0
    %605 = vmatprep.subr.mxu0 0.0
    %606 = vmatpush2.msra.mxu0 0.0
    %607 = vmatprep.subr.mxu0 0.0
    %608 = vmatpush2.msra.mxu0 0.0
    %609 = vmatprep.subr.mxu0 0.0
    %610 = vmatpush2.msra.mxu0 0.0
    %611 = vmatprep.subr.mxu0 0.0
    %612 = vmatpush2.msra.mxu0 0.0
    %613 = vmatprep.subr.mxu0 0.0
    %614 = vmatpush2.msra.mxu0 0.0
    %615 = vmatprep.subr.mxu0 0.0
    %616 = vmatpush2.msra.mxu0 0.0
    %617 = vmatprep.subr.mxu0 0.0
    %618 = vmatpush2.msra.mxu0 0.0
    %619 = vmatprep.mubr.f32.mxu0 0.0
    %620 = vmatmul.mubr.f32.gmra.mxu0 %v536
    %v621 = vpop.f32.mrf.mxu0
    %v622 = vadd.f32 %v553, %v621
    %v623 = vpop.f32.mrf.mxu0
    %624 = vdwg.mxu0
    %v625 = vlaneseq
    %v626 = vand.u32 %v625, 127
    %vm627 = vcmp.lt.s32.totalorder %v626, 2
    %v628 = vsel %vm627, %v622, -1e+30
    %vm629 = vcmask 1040384
    %v630 = vsel %vm629, %v628, -inf
    %631 = vmax.xlane.f32.xlu0 %v630
    %v632 = vpop.xlane.xlu0 %631
    %v633 = vsub.f32 %v628, %v632
    %v634 = vmul.f32 %v633, 1.442695
    %v635 = vpow.pop %v634
    %v636 = vsel %vm629, %v635, 0.0
    %637 = vadd.xlane.f32.xlu0 %v636
    %v638 = vpop.xlane.xlu0 %637
    %v639 = vrcp.pop %v638
    %v640 = vmul.f32 %v635, %v639
    %641 = vst [vmem:[#allocation2] sm:$0x1] %v640
    // Predicated region
    $region34: #{agent_forward.1} parent=1 // pred_check
      _
    $region35: #{agent_forward.1} parent=1 // pred_check_branch
      %643 = sbr.rel (0) target = $region37
    $region36: #{agent_forward.1} parent=1 // pred_region
      %s645 = ssub.s32 16, 16
      %646 = vsyncadd [#allocation3], %s645
      %s648 = sshll.u32 [#allocation2], 4
      %s649 = int_to_ptr.vmem [resolvable:$true] %s648
      %651 = dma.vmem_to_hbm [thread:$0]  %s649, 16, %s8, [#allocation3]
    $region37: #{agent_forward.1} parent=1 // pred_fallthru
      _
    // Predicated region
    $region38: #{agent_forward.1} parent=1 // pred_check
      _
    $region39: #{agent_forward.1} parent=1 // pred_check_branch
      %653 = sbr.rel (0) target = $region41
    $region40: #{agent_forward.1} parent=1 // pred_region
      %654 = dma.done [#allocation3], 16
    $region41: #{agent_forward.1} parent=1 // pred_fallthru
      _
    %655 = vsyncpa [#allocation3], 1

</llo_original>
